<compile_context>
chip_gen: v5e
topology: v5e:2x2
jax: 0.10.0
libtpu: 0.0.40
codegen_flags: <defaults>
</compile_context>

<pallas_src>
import functools
import math
from typing import Dict, Optional, Tuple

import jax
import jax.numpy as jnp
from jax.experimental import pallas as pl
from jax.experimental.pallas import tpu as pltpu


# ---------------------------------------------------------------------------
# Kernel: one (batch, head) tile of contextual attention
# ---------------------------------------------------------------------------
def _contextual_attention_kernel(opt_bias_ref,          # SMEM [H] f32
                                 q_ref, k_ref, v_ref,   # VMEM [1, S, D]
                                 wq_ref, wk_ref, wv_ref,  # VMEM [1, D, dk]
                                 wo_ref,                  # VMEM [1, dk, D]
                                 wo_b_ref,                # VMEM [1, D]
                                 *rest,
                                 inv_scale: float,
                                 has_mask: bool):
    if has_mask:
        mask_ref, out_ref, attn_ref = rest
    else:
        out_ref, attn_ref = rest

    h = pl.program_id(1)

    q = q_ref[0]            # [S, D]
    k = k_ref[0]
    v = v_ref[0]
    wq = wq_ref[0]          # [D, dk]
    wk = wk_ref[0]
    wv = wv_ref[0]
    wo = wo_ref[0]          # [dk, D]

    # Per-head projections (MXU).
    qh = jnp.dot(q, wq, preferred_element_type=jnp.float32)    # [S, dk]
    kh = jnp.dot(k, wk, preferred_element_type=jnp.float32)    # [S, dk]
    vh = jnp.dot(v, wv, preferred_element_type=jnp.float32)    # [S, dk]

    # scores = Q K^T / sqrt(d_k) + optimization_bias[h]
    scores = jax.lax.dot_general(
        qh, kh, (((1,), (1,)), ((), ())),
        preferred_element_type=jnp.float32)                    # [S, S]
    scores = scores * inv_scale + opt_bias_ref[h]

    if has_mask:
        m = mask_ref[0, 0]                                     # [S, S] int32
        scores = jnp.where(m == 0, jnp.float32(-1e9), scores)

    # Row-wise numerically stable softmax.
    s_max = jnp.max(scores, axis=-1, keepdims=True)
    p = jnp.exp(scores - s_max)
    denom = jnp.sum(p, axis=-1, keepdims=True)
    attn = p / denom                                           # [S, S]

    # Dropout(attention_weights) is identity in eval/inference mode.
    attn_ref[0, 0] = attn.astype(attn_ref.dtype)

    ctx = jnp.dot(attn, vh, preferred_element_type=jnp.float32)     # [S, dk]
    contrib = jnp.dot(ctx, wo, preferred_element_type=jnp.float32)  # [S, D]

    # Accumulate w_o(concat_h ctx_h) = sum_h ctx_h @ w_o[h*dk:(h+1)*dk, :]
    # into the resident output block (head axis is the innermost grid axis).
    @pl.when(h == 0)
    def _init():
        out_ref[0] = (contrib + wo_b_ref[...]).astype(out_ref.dtype)

    @pl.when(h != 0)
    def _accumulate():
        out_ref[0] = out_ref[0] + contrib.astype(out_ref.dtype)


# ---------------------------------------------------------------------------
# Module-equivalent wrapper
# ---------------------------------------------------------------------------
def contextual_attention_forward(
        params: Dict[str, jax.Array],
        query: jax.Array,
        key: jax.Array,
        value: jax.Array,
        context: Optional[jax.Array] = None,
        mask: Optional[jax.Array] = None,
) -> Tuple[jax.Array, jax.Array]:
    """JAX/Pallas equivalent of ContextualAttention.forward (eval mode).

    Weight convention: w_q/w_k/w_v/w_o are stored [d_model, d_model] in
    "x @ W" (input-major) layout, i.e. the transpose of torch Linear.weight.
    """
    if context is not None:
        # TODO(synk): context branch of the reference (context_projection /
        # context_gate / context_influence) raises a shape error in PyTorch
        # itself (.expand(...).view(...) with mismatched numel); not translated.
        raise NotImplementedError("context branch is not supported")

    B, S, D = query.shape
    H = params["optimization_bias"].shape[0]
    dk = D // H
    inv_scale = 1.0 / math.sqrt(dk)

    # Pre-split weights per head so BlockSpec trailing dims == full array dims.
    wq_h = params["w_q"].reshape(D, H, dk).transpose(1, 0, 2)   # [H, D, dk]
    wk_h = params["w_k"].reshape(D, H, dk).transpose(1, 0, 2)   # [H, D, dk]
    wv_h = params["w_v"].reshape(D, H, dk).transpose(1, 0, 2)   # [H, D, dk]
    wo_h = params["w_o"].reshape(H, dk, D)                      # [H, dk, D]
    wo_b = params["w_o_bias"].reshape(1, D).astype(jnp.float32)
    opt_bias = params["optimization_bias"].reshape(H).astype(jnp.float32)

    has_mask = mask is not None

    in_specs = [
        pl.BlockSpec(memory_space=pltpu.MemorySpace.SMEM),       # opt_bias [H]
        pl.BlockSpec((1, S, D), lambda b, h: (b, 0, 0)),         # query
        pl.BlockSpec((1, S, D), lambda b, h: (b, 0, 0)),         # key
        pl.BlockSpec((1, S, D), lambda b, h: (b, 0, 0)),         # value
        pl.BlockSpec((1, D, dk), lambda b, h: (h, 0, 0)),        # wq_h
        pl.BlockSpec((1, D, dk), lambda b, h: (h, 0, 0)),        # wk_h
        pl.BlockSpec((1, D, dk), lambda b, h: (h, 0, 0)),        # wv_h
        pl.BlockSpec((1, dk, D), lambda b, h: (h, 0, 0)),        # wo_h
        pl.BlockSpec((1, D), lambda b, h: (0, 0)),               # wo_bias
    ]
    inputs = [opt_bias, query, key, value, wq_h, wk_h, wv_h, wo_h, wo_b]
    if has_mask:
        in_specs.append(pl.BlockSpec((1, 1, S, S), lambda b, h: (b, 0, 0, 0)))
        inputs.append(mask.astype(jnp.int32))

    kernel = functools.partial(_contextual_attention_kernel,
                               inv_scale=inv_scale, has_mask=has_mask)

    out, attn = pl.pallas_call(
        kernel,
        out_shape=(
            jax.ShapeDtypeStruct((B, S, D), query.dtype),
            jax.ShapeDtypeStruct((B, H, S, S), jnp.float32),
        ),
        grid_spec=pltpu.PrefetchScalarGridSpec(
            num_scalar_prefetch=0,
            grid=(B, H),
            in_specs=in_specs,
            out_specs=(
                pl.BlockSpec((1, S, D), lambda b, h: (b, 0, 0)),
                pl.BlockSpec((1, 1, S, S), lambda b, h: (b, h, 0, 0)),
            ),
        ),
        compiler_params=pltpu.CompilerParams(
            dimension_semantics=("parallel", "arbitrary")),
    )(*inputs)
    return out, attn


# ---------------------------------------------------------------------------
# Pure-JAX reference for correctness check
# ---------------------------------------------------------------------------
def _reference_forward(params, query, key, value, context=None, mask=None):
    B, S, D = query.shape
    H = params["optimization_bias"].shape[0]
    dk = D // H
    inv_scale = 1.0 / math.sqrt(dk)
    q = (query @ params["w_q"]).reshape(B, S, H, dk).transpose(0, 2, 1, 3)
    k = (key @ params["w_k"]).reshape(B, S, H, dk).transpose(0, 2, 1, 3)
    v = (value @ params["w_v"]).reshape(B, S, H, dk).transpose(0, 2, 1, 3)
    scores = jnp.einsum("bhqd,bhkd->bhqk", q, k) * inv_scale
    scores = scores + params["optimization_bias"][None, :, :, :]
    if mask is not None:
        scores = jnp.where(mask == 0, -1e9, scores)
    attn = jax.nn.softmax(scores, axis=-1)
    ctx = jnp.einsum("bhqk,bhkd->bhqd", attn, v)
    ctx = ctx.transpose(0, 2, 1, 3).reshape(B, S, D)
    out = ctx @ params["w_o"] + params["w_o_bias"]
    return out, attn


if __name__ == "__main__":
    root = jax.random.PRNGKey(0)
    (k_q, k_k, k_v, k_wq, k_wk, k_wv,
     k_wo, k_wob, k_bias) = jax.random.split(root, 9)

    batch, seq, d_model, n_heads = 2, 8, 32, 4
    context_dim = 16   # constructor arg only; context path untranslated
    d_k = d_model // n_heads

    query = jax.random.normal(k_q, (batch, seq, d_model), dtype=jnp.float32)
    key_t = jax.random.normal(k_k, (batch, seq, d_model), dtype=jnp.float32)
    value = jax.random.normal(k_v, (batch, seq, d_model), dtype=jnp.float32)

    params = {
        "w_q": 0.1 * jax.random.normal(k_wq, (d_model, d_model), jnp.float32),
        "w_k": 0.1 * jax.random.normal(k_wk, (d_model, d_model), jnp.float32),
        "w_v": 0.1 * jax.random.normal(k_wv, (d_model, d_model), jnp.float32),
        "w_o": 0.1 * jax.random.normal(k_wo, (d_model, d_model), jnp.float32),
        "w_o_bias": 0.1 * jax.random.normal(k_wob, (d_model,), jnp.float32),
        "optimization_bias": 0.1 * jax.random.normal(
            k_bias, (n_heads, 1, 1), jnp.float32),
    }

    # Causal mask [B, 1, S, S]; 0 = masked (matches masked_fill(mask == 0, -1e9)).
    causal = (jnp.arange(seq)[:, None] >= jnp.arange(seq)[None, :]).astype(jnp.int32)
    mask = jnp.broadcast_to(causal[None, None], (batch, 1, seq, seq))

    out, attn = contextual_attention_forward(
        params, query, key_t, value, context=None, mask=mask)
    jax.block_until_ready(out)
    jax.block_until_ready(attn)

    ref_out, ref_attn = _reference_forward(
        params, query, key_t, value, mask=mask)

    assert out.shape == (batch, seq, d_model)
    assert attn.shape == (batch, n_heads, seq, seq)
    assert out.dtype == jnp.float32 and attn.dtype == jnp.float32
    assert jnp.allclose(attn, ref_attn, atol=1e-5, rtol=1e-5)
    assert jnp.allclose(out, ref_out, atol=1e-5, rtol=1e-5)
    assert jnp.allclose(attn.sum(-1), 1.0, atol=1e-5)   # rows are a softmax
    # masked (future) positions carry zero attention
    assert jnp.allclose(jnp.where(mask == 0, attn, 0.0), 0.0, atol=1e-7)

    print("KERNEL_OK")
</pallas_src>

<mosaic_0001>
module attributes {stable_mosaic.version = 11 : i64} {
  func.func @_contextual_attention_kernel(%arg0: i32, %arg1: i32, %arg2: memref<4xf32, #tpu.memory_space<smem>>, %arg3: memref<1x8x32xf32, #tpu.memory_space<vmem>>, %arg4: memref<1x8x32xf32, #tpu.memory_space<vmem>>, %arg5: memref<1x8x32xf32, #tpu.memory_space<vmem>>, %arg6: memref<1x32x8xf32, #tpu.memory_space<vmem>>, %arg7: memref<1x32x8xf32, #tpu.memory_space<vmem>>, %arg8: memref<1x32x8xf32, #tpu.memory_space<vmem>>, %arg9: memref<1x8x32xf32, #tpu.memory_space<vmem>>, %arg10: memref<1x32xf32, #tpu.memory_space<vmem>>, %arg11: memref<1x1x8x8xi32, #tpu.memory_space<vmem>>, %arg12: memref<1x8x32xf32, #tpu.memory_space<vmem>>, %arg13: memref<1x1x8x8xf32, #tpu.memory_space<vmem>>) attributes {dimension_semantics = [#tpu.dimension_semantics<parallel>, #tpu.dimension_semantics<arbitrary>], iteration_bounds = array<i64: 2, 4>, scalar_prefetch = 0 : i64, scratch_operands = 0 : i64, tpu.core_type = #tpu.core_type<tc>, window_params = [{transform_indices = @transform_0, window_bounds = array<i64: 4>}, {transform_indices = @transform_1, window_bounds = array<i64: 1, 8, 32>}, {transform_indices = @transform_2, window_bounds = array<i64: 1, 8, 32>}, {transform_indices = @transform_3, window_bounds = array<i64: 1, 8, 32>}, {transform_indices = @transform_4, window_bounds = array<i64: 1, 32, 8>}, {transform_indices = @transform_5, window_bounds = array<i64: 1, 32, 8>}, {transform_indices = @transform_6, window_bounds = array<i64: 1, 32, 8>}, {transform_indices = @transform_7, window_bounds = array<i64: 1, 8, 32>}, {pipeline_mode = #tpu.pipeline_mode<synchronous>, transform_indices = @transform_8, window_bounds = array<i64: 1, 32>}, {transform_indices = @transform_9, window_bounds = array<i64: 1, 1, 8, 8>}, {transform_indices = @transform_10, window_bounds = array<i64: 1, 8, 32>}, {transform_indices = @transform_11, window_bounds = array<i64: 1, 1, 8, 8>}]} {
    %c0 = arith.constant 0 : index
    %c0_0 = arith.constant 0 : index
    %c0_1 = arith.constant 0 : index
    %0 = vector.load %arg3[%c0, %c0_0, %c0_1] : memref<1x8x32xf32, #tpu.memory_space<vmem>>, vector<1x8x32xf32>
    %1 = vector.shape_cast %0 : vector<1x8x32xf32> to vector<8x32xf32>
    %c0_2 = arith.constant 0 : index
    %c0_3 = arith.constant 0 : index
    %c0_4 = arith.constant 0 : index
    %2 = vector.load %arg4[%c0_2, %c0_3, %c0_4] : memref<1x8x32xf32, #tpu.memory_space<vmem>>, vector<1x8x32xf32>
    %3 = vector.shape_cast %2 : vector<1x8x32xf32> to vector<8x32xf32>
    %c0_5 = arith.constant 0 : index
    %c0_6 = arith.constant 0 : index
    %c0_7 = arith.constant 0 : index
    %4 = vector.load %arg5[%c0_5, %c0_6, %c0_7] : memref<1x8x32xf32, #tpu.memory_space<vmem>>, vector<1x8x32xf32>
    %5 = vector.shape_cast %4 : vector<1x8x32xf32> to vector<8x32xf32>
    %c0_8 = arith.constant 0 : index
    %c0_9 = arith.constant 0 : index
    %c0_10 = arith.constant 0 : index
    %6 = vector.load %arg6[%c0_8, %c0_9, %c0_10] : memref<1x32x8xf32, #tpu.memory_space<vmem>>, vector<1x32x8xf32>
    %7 = vector.shape_cast %6 : vector<1x32x8xf32> to vector<32x8xf32>
    %c0_11 = arith.constant 0 : index
    %c0_12 = arith.constant 0 : index
    %c0_13 = arith.constant 0 : index
    %8 = vector.load %arg7[%c0_11, %c0_12, %c0_13] : memref<1x32x8xf32, #tpu.memory_space<vmem>>, vector<1x32x8xf32>
    %9 = vector.shape_cast %8 : vector<1x32x8xf32> to vector<32x8xf32>
    %c0_14 = arith.constant 0 : index
    %c0_15 = arith.constant 0 : index
    %c0_16 = arith.constant 0 : index
    %10 = vector.load %arg8[%c0_14, %c0_15, %c0_16] : memref<1x32x8xf32, #tpu.memory_space<vmem>>, vector<1x32x8xf32>
    %11 = vector.shape_cast %10 : vector<1x32x8xf32> to vector<32x8xf32>
    %c0_17 = arith.constant 0 : index
    %c0_18 = arith.constant 0 : index
    %c0_19 = arith.constant 0 : index
    %12 = vector.load %arg9[%c0_17, %c0_18, %c0_19] : memref<1x8x32xf32, #tpu.memory_space<vmem>>, vector<1x8x32xf32>
    %13 = vector.shape_cast %12 : vector<1x8x32xf32> to vector<8x32xf32>
    %cst = arith.constant dense<0.000000e+00> : vector<8x8xf32>
    %14 = tpu.matmul %1, %7, %cst {dimension_numbers = #tpu.dot_dimension_numbers<[1], [0], [0], [1], [0, 0, 1, 1], [], []>} : vector<8x32xf32>, vector<32x8xf32>, vector<8x8xf32> -> vector<8x8xf32>
    %cst_20 = arith.constant dense<0.000000e+00> : vector<8x8xf32>
    %15 = tpu.matmul %3, %9, %cst_20 {dimension_numbers = #tpu.dot_dimension_numbers<[1], [0], [0], [1], [0, 0, 1, 1], [], []>} : vector<8x32xf32>, vector<32x8xf32>, vector<8x8xf32> -> vector<8x8xf32>
    %cst_21 = arith.constant dense<0.000000e+00> : vector<8x8xf32>
    %16 = tpu.matmul %5, %11, %cst_21 {dimension_numbers = #tpu.dot_dimension_numbers<[1], [0], [0], [1], [0, 0, 1, 1], [], []>} : vector<8x32xf32>, vector<32x8xf32>, vector<8x8xf32> -> vector<8x8xf32>
    %cst_22 = arith.constant dense<0.000000e+00> : vector<8x8xf32>
    %17 = tpu.matmul %14, %15, %cst_22 {dimension_numbers = #tpu.dot_dimension_numbers<[1], [1], [0], [0], [0, 0, 1, 0], [], []>} : vector<8x8xf32>, vector<8x8xf32>, vector<8x8xf32> -> vector<8x8xf32>
    %cst_23 = arith.constant 0.353553385 : f32
    %18 = vector.broadcast %cst_23 : f32 to vector<8x8xf32>
    %19 = arith.mulf %17, %18 : vector<8x8xf32>
    %20 = arith.index_cast %arg1 : i32 to index
    %21 = memref.load %arg2[%20] : memref<4xf32, #tpu.memory_space<smem>>
    %22 = vector.broadcast %21 : f32 to vector<8x8xf32>
    %23 = arith.addf %19, %22 : vector<8x8xf32>
    %c0_24 = arith.constant 0 : index
    %c0_25 = arith.constant 0 : index
    %c0_26 = arith.constant 0 : index
    %c0_27 = arith.constant 0 : index
    %24 = vector.load %arg11[%c0_24, %c0_25, %c0_26, %c0_27] : memref<1x1x8x8xi32, #tpu.memory_space<vmem>>, vector<1x1x8x8xi32>
    %25 = vector.shape_cast %24 : vector<1x1x8x8xi32> to vector<8x8xi32>
    %c0_i32 = arith.constant 0 : i32
    %26 = vector.broadcast %c0_i32 : i32 to vector<8x8xi32>
    %27 = arith.cmpi eq, %25, %26 : vector<8x8xi32>
    %cst_28 = arith.constant -1.000000e+09 : f32
    %28 = vector.broadcast %cst_28 : f32 to vector<8x8xf32>
    %29 = arith.select %27, %28, %23 : vector<8x8xi1>, vector<8x8xf32>
    %cst_29 = arith.constant dense<0xFF800000> : vector<8xf32>
    %30 = vector.multi_reduction <maximumf>, %29, %cst_29 [1] : vector<8x8xf32> to vector<8xf32>
    %31 = vector.shape_cast %30 : vector<8xf32> to vector<8x1xf32>
    %32 = vector.broadcast %31 : vector<8x1xf32> to vector<8x8xf32>
    %33 = arith.subf %29, %32 : vector<8x8xf32>
    %34 = math.exp %33 : vector<8x8xf32>
    %cst_30 = arith.constant dense<0.000000e+00> : vector<8xf32>
    %35 = vector.multi_reduction <add>, %34, %cst_30 [1] : vector<8x8xf32> to vector<8xf32>
    %36 = vector.shape_cast %35 : vector<8xf32> to vector<8x1xf32>
    %37 = vector.broadcast %36 : vector<8x1xf32> to vector<8x8xf32>
    %38 = arith.divf %34, %37 : vector<8x8xf32>
    %c0_31 = arith.constant 0 : index
    %c0_32 = arith.constant 0 : index
    %c0_33 = arith.constant 0 : index
    %c0_34 = arith.constant 0 : index
    %39 = vector.load %arg13[%c0_31, %c0_32, %c0_33, %c0_34] : memref<1x1x8x8xf32, #tpu.memory_space<vmem>>, vector<1x1x8x8xf32>
    %40 = vector.shape_cast %39 : vector<1x1x8x8xf32> to vector<8x8xf32>
    %41 = vector.shape_cast %38 : vector<8x8xf32> to vector<1x1x8x8xf32>
    tpu.vector_store %arg13[%c0_31, %c0_32, %c0_33, %c0_34], %41 {strides = array<i32>} : memref<1x1x8x8xf32, #tpu.memory_space<vmem>>, vector<1x1x8x8xf32>,
    %cst_35 = arith.constant dense<0.000000e+00> : vector<8x8xf32>
    %42 = tpu.matmul %38, %16, %cst_35 {dimension_numbers = #tpu.dot_dimension_numbers<[1], [0], [0], [1], [0, 0, 1, 1], [], []>} : vector<8x8xf32>, vector<8x8xf32>, vector<8x8xf32> -> vector<8x8xf32>
    %cst_36 = arith.constant dense<0.000000e+00> : vector<8x32xf32>
    %43 = tpu.matmul %42, %13, %cst_36 {dimension_numbers = #tpu.dot_dimension_numbers<[1], [0], [0], [1], [0, 0, 1, 1], [], []>} : vector<8x8xf32>, vector<8x32xf32>, vector<8x32xf32> -> vector<8x32xf32>
    %c0_i32_37 = arith.constant 0 : i32
    %44 = arith.cmpi eq, %arg1, %c0_i32_37 : i32
    %45 = arith.extui %44 : i1 to i32
    %c0_i32_38 = arith.constant 0 : i32
    %46 = arith.cmpi ne, %45, %c0_i32_38 : i32
    scf.if %46 {
      %c0_41 = arith.constant 0 : index
      %c0_42 = arith.constant 0 : index
      %50 = vector.load %arg10[%c0_41, %c0_42] : memref<1x32xf32, #tpu.memory_space<vmem>>, vector<1x32xf32>
      %51 = vector.broadcast %50 : vector<1x32xf32> to vector<8x32xf32>
      %52 = arith.addf %43, %51 : vector<8x32xf32>
      %c0_43 = arith.constant 0 : index
      %c0_44 = arith.constant 0 : index
      %c0_45 = arith.constant 0 : index
      %53 = vector.load %arg12[%c0_43, %c0_44, %c0_45] : memref<1x8x32xf32, #tpu.memory_space<vmem>>, vector<1x8x32xf32>
      %54 = vector.shape_cast %53 : vector<1x8x32xf32> to vector<8x32xf32>
      %55 = vector.shape_cast %52 : vector<8x32xf32> to vector<1x8x32xf32>
      tpu.vector_store %arg12[%c0_43, %c0_44, %c0_45], %55 {strides = array<i32>} : memref<1x8x32xf32, #tpu.memory_space<vmem>>, vector<1x8x32xf32>,
    } else {
    }
    %c0_i32_39 = arith.constant 0 : i32
    %47 = arith.cmpi ne, %arg1, %c0_i32_39 : i32
    %48 = arith.extui %47 : i1 to i32
    %c0_i32_40 = arith.constant 0 : i32
    %49 = arith.cmpi ne, %48, %c0_i32_40 : i32
    scf.if %49 {
      %c0_41 = arith.constant 0 : index
      %c0_42 = arith.constant 0 : index
      %c0_43 = arith.constant 0 : index
      %50 = vector.load %arg12[%c0_41, %c0_42, %c0_43] : memref<1x8x32xf32, #tpu.memory_space<vmem>>, vector<1x8x32xf32>
      %51 = vector.shape_cast %50 : vector<1x8x32xf32> to vector<8x32xf32>
      %52 = arith.addf %51, %43 : vector<8x32xf32>
      %c0_44 = arith.constant 0 : index
      %c0_45 = arith.constant 0 : index
      %c0_46 = arith.constant 0 : index
      %53 = vector.load %arg12[%c0_44, %c0_45, %c0_46] : memref<1x8x32xf32, #tpu.memory_space<vmem>>, vector<1x8x32xf32>
      %54 = vector.shape_cast %53 : vector<1x8x32xf32> to vector<8x32xf32>
      %55 = vector.shape_cast %52 : vector<8x32xf32> to vector<1x8x32xf32>
      tpu.vector_store %arg12[%c0_44, %c0_45, %c0_46], %55 {strides = array<i32>} : memref<1x8x32xf32, #tpu.memory_space<vmem>>, vector<1x8x32xf32>,
    } else {
    }
    return
  }
  func.func @transform_0(%arg0: i32, %arg1: i32) -> i32 {
    %c0_i32 = arith.constant 0 : i32
    %c0_i32_0 = arith.constant 0 : i32
    return %c0_i32 : i32
  }
  func.func @transform_1(%arg0: i32, %arg1: i32) -> (i32, i32, i32) {
    %c0_i32 = arith.constant 0 : i32
    %c0_i32_0 = arith.constant 0 : i32
    %c0_i32_1 = arith.constant 0 : i32
    return %arg0, %c0_i32, %c0_i32_0 : i32, i32, i32
  }
  func.func @transform_2(%arg0: i32, %arg1: i32) -> (i32, i32, i32) {
    %c0_i32 = arith.constant 0 : i32
    %c0_i32_0 = arith.constant 0 : i32
    %c0_i32_1 = arith.constant 0 : i32
    return %arg0, %c0_i32, %c0_i32_0 : i32, i32, i32
  }
  func.func @transform_3(%arg0: i32, %arg1: i32) -> (i32, i32, i32) {
    %c0_i32 = arith.constant 0 : i32
    %c0_i32_0 = arith.constant 0 : i32
    %c0_i32_1 = arith.constant 0 : i32
    return %arg0, %c0_i32, %c0_i32_0 : i32, i32, i32
  }
  func.func @transform_4(%arg0: i32, %arg1: i32) -> (i32, i32, i32) {
    %c0_i32 = arith.constant 0 : i32
    %c0_i32_0 = arith.constant 0 : i32
    %c0_i32_1 = arith.constant 0 : i32
    return %arg1, %c0_i32, %c0_i32_0 : i32, i32, i32
  }
  func.func @transform_5(%arg0: i32, %arg1: i32) -> (i32, i32, i32) {
    %c0_i32 = arith.constant 0 : i32
    %c0_i32_0 = arith.constant 0 : i32
    %c0_i32_1 = arith.constant 0 : i32
    return %arg1, %c0_i32, %c0_i32_0 : i32, i32, i32
  }
  func.func @transform_6(%arg0: i32, %arg1: i32) -> (i32, i32, i32) {
    %c0_i32 = arith.constant 0 : i32
    %c0_i32_0 = arith.constant 0 : i32
    %c0_i32_1 = arith.constant 0 : i32
    return %arg1, %c0_i32, %c0_i32_0 : i32, i32, i32
  }
  func.func @transform_7(%arg0: i32, %arg1: i32) -> (i32, i32, i32) {
    %c0_i32 = arith.constant 0 : i32
    %c0_i32_0 = arith.constant 0 : i32
    %c0_i32_1 = arith.constant 0 : i32
    return %arg1, %c0_i32, %c0_i32_0 : i32, i32, i32
  }
  func.func @transform_8(%arg0: i32, %arg1: i32) -> (i32, i32) {
    %c0_i32 = arith.constant 0 : i32
    %c0_i32_0 = arith.constant 0 : i32
    %c0_i32_1 = arith.constant 0 : i32
    return %c0_i32, %c0_i32_0 : i32, i32
  }
  func.func @transform_9(%arg0: i32, %arg1: i32) -> (i32, i32, i32, i32) {
    %c0_i32 = arith.constant 0 : i32
    %c0_i32_0 = arith.constant 0 : i32
    %c0_i32_1 = arith.constant 0 : i32
    %c0_i32_2 = arith.constant 0 : i32
    return %arg0, %c0_i32, %c0_i32_0, %c0_i32_1 : i32, i32, i32, i32
  }
  func.func @transform_10(%arg0: i32, %arg1: i32) -> (i32, i32, i32) {
    %c0_i32 = arith.constant 0 : i32
    %c0_i32_0 = arith.constant 0 : i32
    %c0_i32_1 = arith.constant 0 : i32
    return %arg0, %c0_i32, %c0_i32_0 : i32, i32, i32
  }
  func.func @transform_11(%arg0: i32, %arg1: i32) -> (i32, i32, i32, i32) {
    %c0_i32 = arith.constant 0 : i32
    %c0_i32_0 = arith.constant 0 : i32
    %c0_i32_1 = arith.constant 0 : i32
    return %arg0, %arg1, %c0_i32, %c0_i32_0 : i32, i32, i32, i32
  }
}

</mosaic_0001>

<llo_original>
// kernel: tpu_custom_call.1
$region0: #{tpu_custom_call.1}
  #allocation0 [shape = 'u32[]', space=smem, size = 0x4, offset = 0x4, fixed_abs, tag = 'smem constant byte address 0x4 - core index']
  #allocation1 [shape = 'u32[72,128]{1,0:T(1,128)}', space=vmem, size = 0x9000, scoped, tag = 'internal scratch']
  %s0 = inlined_call_operand.vmem [shape: f32[4], index: 0, kind: input, shape index: {}]
  %s1 = inlined_call_operand.vmem [shape: f32[2,8,32], index: 1, kind: input, shape index: {}]
  %s2 = inlined_call_operand.vmem [shape: f32[2,8,32], index: 2, kind: input, shape index: {}]
  %s3 = inlined_call_operand.vmem [shape: f32[2,8,32], index: 3, kind: input, shape index: {}]
  %s4 = inlined_call_operand.vmem [shape: f32[4,32,8], index: 4, kind: input, shape index: {}]
  %s5 = inlined_call_operand.vmem [shape: f32[4,32,8], index: 5, kind: input, shape index: {}]
  %s6 = inlined_call_operand.vmem [shape: f32[4,32,8], index: 6, kind: input, shape index: {}]
  %s7 = inlined_call_operand.vmem [shape: f32[4,8,32], index: 7, kind: input, shape index: {}]
  %s8 = inlined_call_operand.vmem [shape: f32[1,32], index: 8, kind: input, shape index: {}]
  %s9 = inlined_call_operand.vmem [shape: s32[2,1,8,8], index: 9, kind: input, shape index: {}]
  %s10 = inlined_call_operand.hbm [shape: f32[2,8,32], index: 10, kind: output, shape index: {0}]
  %s11 = inlined_call_operand.hbm [shape: f32[2,4,8,8], index: 11, kind: output, shape index: {1}]
  %12 = xla_tuple %s10, %s11
  %s13 = sld [smem:[#allocation0]]
  $region93: #{tpu_custom_call.1} parent=0
    _
  %s15 = ssub.s32 1, %s13
  %s16 = scalar_select 0, %s15, %s13
  $region1: #{tpu_custom_call.1} parent=0
    #allocation2 [shape = 'u8[512]{0}', space=smem, size = 0x200, scoped, tag = 'input window, operand 0, single buffered']
    #allocation3 [shape = 's32[2]{0}', space=sflag, size = 0x8, scoped, tag = 'scoped memory for tpu_custom_call.1']
    #allocation4 [shape = 's32[2]{0}', space=sflag, size = 0x8, scoped, tag = 'scoped memory for tpu_custom_call.1']
    #allocation5 [shape = 'u8[8192]{0}', space=vmem, size = 0x2000, scoped, tag = 'output window, operand 0']
    #allocation6 [shape = 'u8[8192]{0}', space=vmem, size = 0x2000, scoped, tag = 'output window, operand 1']
    #allocation7 [shape = 's32[2]{0}', space=sflag, size = 0x8, scoped, tag = 'scoped memory for tpu_custom_call.1']
    %17 = vsyncpa [#allocation4], 0
    %18 = vsyncpa [#allocation3], 0
    %s19 = scalar_lea.sflag [#allocation3], 1
    %20 = vsyncpa %s19, 0
    %21 = vsyncpa [#allocation7], 0
    %s22 = scalar_lea.sflag [#allocation7], 1
    %23 = vsyncpa %s22, 0
    loop: start=0, step=1, limit=10
    $region2: #{tpu_custom_call.1} parent=1 // loop_pre_header
      _
    $region3: #{tpu_custom_call.1} parent=1 // loop_header
      %s25 = sphi 0, %s29
      %p26 = scmp.ge.s32.totalorder %s25, 10
      %s32 = sphi 0, %s44
      %s33 = sphi 0, %s40
      %s34 = sphi 0, %s32
      %s35 = sphi 0, %s33
      %s36 = sphi 0, %s34
      %s37 = sphi 0, %s35
      %s45 = sphi 0, %s45
      %s47 = sphi 0, %s45
      %s48 = sphi 0, %s47
      %s62 = sphi 0, %s48
      %s68 = sphi 0, %s70
      %s71 = sphi 0, %s68
      %s72 = sphi 0, %s71
      %s88 = sphi 0, %s72
      %s94 = sphi 0, %s96
      %s97 = sphi 0, %s94
      %s98 = sphi 0, %s97
      %s114 = sphi 0, %s98
      %s120 = sphi 0, %s122
      %s123 = sphi 0, %s120
      %s124 = sphi 0, %s123
      %s140 = sphi 0, %s124
      %s146 = sphi 0, %s148
      %s149 = sphi 0, %s146
      %s150 = sphi 0, %s149
      %s166 = sphi 0, %s150
      %s172 = sphi 0, %s174
      %s175 = sphi 0, %s172
      %s176 = sphi 0, %s175
      %s192 = sphi 0, %s176
      %s198 = sphi 0, %s200
      %s201 = sphi 0, %s198
      %s202 = sphi 0, %s201
      %s218 = sphi 0, %s202
      %s224 = sphi 0, %s226
      %s227 = sphi 0, %s224
      %s228 = sphi 0, %s227
      %s244 = sphi 0, %s228
      %s248 = sphi 0, %s248
      %s250 = sphi 0, %s248
      %s251 = sphi 0, %s250
      %s265 = sphi 0, %s251
      %s271 = sphi 0, %s273
      %s274 = sphi 0, %s271
      %s275 = sphi 0, %s274
      %s291 = sphi 0, %s275
      %s297 = sphi 0, %s299
      %s300 = sphi 0, %s297
      %s301 = sphi 0, %s300
      %s317 = sphi 0, %s301
      %s325 = sphi 0, %s327
      %s328 = sphi 0, %s325
      %s329 = sphi 0, %s328
      %s345 = sphi 0, %s329
    $region4: #{tpu_custom_call.1} parent=1 // loop_header_branch
      %28 = sbr.rel (%p26) target = $region8
    $region5: #{tpu_custom_call.1} parent=1 // loop_body
      %s30 = ssub.s32 %s25, 1
      %s31 = ssub.s32 %s25, 2
      %s38 = sadd.s32 1, %s33
      %p39 = scmp.ge.s32.totalorder %s38, 4
      %s40 = scalar_select %p39, 0, %s38
      %s41 = sadd.s32 1, %s32
      %s42 = scalar_select %p39, %s41, %s32
      %p43 = scmp.ge.s32.totalorder %s42, 2
      %s44 = scalar_select %p43, 0, %s42
      %s46 = sadd.s32 %s45, 1
      %p49 = scmp.eq.s32.totalorder %s25, 7
      %p50 = scmp.ne.s32.totalorder %s45, %s47
      %p51 = scmp.eq.s32.totalorder %s25, 0
      %p52 = por %p50, %p51
      %p53 = scmp.ne.s32.totalorder %s45, %s47
      %p54 = scmp.eq.s32.totalorder %s30, 7
      %p55 = por %p53, %p54
      %p56 = scmp.ne.s32.totalorder %s47, %s48
      %p57 = scmp.eq.s32.totalorder %s30, 0
      %p58 = por %p56, %p57
      %p59 = scmp.ne.s32.totalorder %s47, %s48
      %p60 = scmp.eq.s32.totalorder %s31, 7
      %p61 = por %p59, %p60
      %p63 = scmp.ne.s32.totalorder %s48, %s62
      %p64 = scmp.eq.s32.totalorder %s31, 0
      %p65 = por %p63, %p64
      %s66 = ssub.s32 %s32, %s44
      %p67 = scmp.eq.s32.totalorder %s66, 0
      %s69 = sadd.s32 %s68, 1
      %s70 = scalar_select %p67, %s68, %s69
      %p73 = pneg %p67
      %p74 = scmp.eq.s32.totalorder %s25, 7
      %p75 = por %p73, %p74
      %p76 = scmp.ne.s32.totalorder %s68, %s71
      %p77 = scmp.eq.s32.totalorder %s25, 0
      %p78 = por %p76, %p77
      %p79 = scmp.ne.s32.totalorder %s68, %s71
      %p80 = scmp.eq.s32.totalorder %s30, 7
      %p81 = por %p79, %p80
      %p82 = scmp.ne.s32.totalorder %s71, %s72
      %p83 = scmp.eq.s32.totalorder %s30, 0
      %p84 = por %p82, %p83
      %p85 = scmp.ne.s32.totalorder %s71, %s72
      %p86 = scmp.eq.s32.totalorder %s31, 7
      %p87 = por %p85, %p86
      %p89 = scmp.ne.s32.totalorder %s72, %s88
      %p90 = scmp.eq.s32.totalorder %s31, 0
      %p91 = por %p89, %p90
      %s92 = ssub.s32 %s32, %s44
      %p93 = scmp.eq.s32.totalorder %s92, 0
      %s95 = sadd.s32 %s94, 1
      %s96 = scalar_select %p93, %s94, %s95
      %p99 = pneg %p93
      %p100 = scmp.eq.s32.totalorder %s25, 7
      %p101 = por %p99, %p100
      %p102 = scmp.ne.s32.totalorder %s94, %s97
      %p103 = scmp.eq.s32.totalorder %s25, 0
      %p104 = por %p102, %p103
      %p105 = scmp.ne.s32.totalorder %s94, %s97
      %p106 = scmp.eq.s32.totalorder %s30, 7
      %p107 = por %p105, %p106
      %p108 = scmp.ne.s32.totalorder %s97, %s98
      %p109 = scmp.eq.s32.totalorder %s30, 0
      %p110 = por %p108, %p109
      %p111 = scmp.ne.s32.totalorder %s97, %s98
      %p112 = scmp.eq.s32.totalorder %s31, 7
      %p113 = por %p111, %p112
      %p115 = scmp.ne.s32.totalorder %s98, %s114
      %p116 = scmp.eq.s32.totalorder %s31, 0
      %p117 = por %p115, %p116
      %s118 = ssub.s32 %s32, %s44
      %p119 = scmp.eq.s32.totalorder %s118, 0
      %s121 = sadd.s32 %s120, 1
      %s122 = scalar_select %p119, %s120, %s121
      %p125 = pneg %p119
      %p126 = scmp.eq.s32.totalorder %s25, 7
      %p127 = por %p125, %p126
      %p128 = scmp.ne.s32.totalorder %s120, %s123
      %p129 = scmp.eq.s32.totalorder %s25, 0
      %p130 = por %p128, %p129
      %p131 = scmp.ne.s32.totalorder %s120, %s123
      %p132 = scmp.eq.s32.totalorder %s30, 7
      %p133 = por %p131, %p132
      %p134 = scmp.ne.s32.totalorder %s123, %s124
      %p135 = scmp.eq.s32.totalorder %s30, 0
      %p136 = por %p134, %p135
      %p137 = scmp.ne.s32.totalorder %s123, %s124
      %p138 = scmp.eq.s32.totalorder %s31, 7
      %p139 = por %p137, %p138
      %p141 = scmp.ne.s32.totalorder %s124, %s140
      %p142 = scmp.eq.s32.totalorder %s31, 0
      %p143 = por %p141, %p142
      %s144 = ssub.s32 %s33, %s40
      %p145 = scmp.eq.s32.totalorder %s144, 0
      %s147 = sadd.s32 %s146, 1
      %s148 = scalar_select %p145, %s146, %s147
      %p151 = pneg %p145
      %p152 = scmp.eq.s32.totalorder %s25, 7
      %p153 = por %p151, %p152
      %p154 = scmp.ne.s32.totalorder %s146, %s149
      %p155 = scmp.eq.s32.totalorder %s25, 0
      %p156 = por %p154, %p155
      %p157 = scmp.ne.s32.totalorder %s146, %s149
      %p158 = scmp.eq.s32.totalorder %s30, 7
      %p159 = por %p157, %p158
      %p160 = scmp.ne.s32.totalorder %s149, %s150
      %p161 = scmp.eq.s32.totalorder %s30, 0
      %p162 = por %p160, %p161
      %p163 = scmp.ne.s32.totalorder %s149, %s150
      %p164 = scmp.eq.s32.totalorder %s31, 7
      %p165 = por %p163, %p164
      %p167 = scmp.ne.s32.totalorder %s150, %s166
      %p168 = scmp.eq.s32.totalorder %s31, 0
      %p169 = por %p167, %p168
      %s170 = ssub.s32 %s33, %s40
      %p171 = scmp.eq.s32.totalorder %s170, 0
      %s173 = sadd.s32 %s172, 1
      %s174 = scalar_select %p171, %s172, %s173
      %p177 = pneg %p171
      %p178 = scmp.eq.s32.totalorder %s25, 7
      %p179 = por %p177, %p178
      %p180 = scmp.ne.s32.totalorder %s172, %s175
      %p181 = scmp.eq.s32.totalorder %s25, 0
      %p182 = por %p180, %p181
      %p183 = scmp.ne.s32.totalorder %s172, %s175
      %p184 = scmp.eq.s32.totalorder %s30, 7
      %p185 = por %p183, %p184
      %p186 = scmp.ne.s32.totalorder %s175, %s176
      %p187 = scmp.eq.s32.totalorder %s30, 0
      %p188 = por %p186, %p187
      %p189 = scmp.ne.s32.totalorder %s175, %s176
      %p190 = scmp.eq.s32.totalorder %s31, 7
      %p191 = por %p189, %p190
      %p193 = scmp.ne.s32.totalorder %s176, %s192
      %p194 = scmp.eq.s32.totalorder %s31, 0
      %p195 = por %p193, %p194
      %s196 = ssub.s32 %s33, %s40
      %p197 = scmp.eq.s32.totalorder %s196, 0
      %s199 = sadd.s32 %s198, 1
      %s200 = scalar_select %p197, %s198, %s199
      %p203 = pneg %p197
      %p204 = scmp.eq.s32.totalorder %s25, 7
      %p205 = por %p203, %p204
      %p206 = scmp.ne.s32.totalorder %s198, %s201
      %p207 = scmp.eq.s32.totalorder %s25, 0
      %p208 = por %p206, %p207
      %p209 = scmp.ne.s32.totalorder %s198, %s201
      %p210 = scmp.eq.s32.totalorder %s30, 7
      %p211 = por %p209, %p210
      %p212 = scmp.ne.s32.totalorder %s201, %s202
      %p213 = scmp.eq.s32.totalorder %s30, 0
      %p214 = por %p212, %p213
      %p215 = scmp.ne.s32.totalorder %s201, %s202
      %p216 = scmp.eq.s32.totalorder %s31, 7
      %p217 = por %p215, %p216
      %p219 = scmp.ne.s32.totalorder %s202, %s218
      %p220 = scmp.eq.s32.totalorder %s31, 0
      %p221 = por %p219, %p220
      %s222 = ssub.s32 %s33, %s40
      %p223 = scmp.eq.s32.totalorder %s222, 0
      %s225 = sadd.s32 %s224, 1
      %s226 = scalar_select %p223, %s224, %s225
      %p229 = pneg %p223
      %p230 = scmp.eq.s32.totalorder %s25, 7
      %p231 = por %p229, %p230
      %p232 = scmp.ne.s32.totalorder %s224, %s227
      %p233 = scmp.eq.s32.totalorder %s25, 0
      %p234 = por %p232, %p233
      %p235 = scmp.ne.s32.totalorder %s224, %s227
      %p236 = scmp.eq.s32.totalorder %s30, 7
      %p237 = por %p235, %p236
      %p238 = scmp.ne.s32.totalorder %s227, %s228
      %p239 = scmp.eq.s32.totalorder %s30, 0
      %p240 = por %p238, %p239
      %p241 = scmp.ne.s32.totalorder %s227, %s228
      %p242 = scmp.eq.s32.totalorder %s31, 7
      %p243 = por %p241, %p242
      %p245 = scmp.ne.s32.totalorder %s228, %s244
      %p246 = scmp.eq.s32.totalorder %s31, 0
      %p247 = por %p245, %p246
      %s249 = sadd.s32 %s248, 1
      %p252 = scmp.eq.s32.totalorder %s25, 7
      %p253 = scmp.ne.s32.totalorder %s248, %s250
      %p254 = scmp.eq.s32.totalorder %s25, 0
      %p255 = por %p253, %p254
      %p256 = scmp.ne.s32.totalorder %s248, %s250
      %p257 = scmp.eq.s32.totalorder %s30, 7
      %p258 = por %p256, %p257
      %p259 = scmp.ne.s32.totalorder %s250, %s251
      %p260 = scmp.eq.s32.totalorder %s30, 0
      %p261 = por %p259, %p260
      %p262 = scmp.ne.s32.totalorder %s250, %s251
      %p263 = scmp.eq.s32.totalorder %s31, 7
      %p264 = por %p262, %p263
      %p266 = scmp.ne.s32.totalorder %s251, %s265
      %p267 = scmp.eq.s32.totalorder %s31, 0
      %p268 = por %p266, %p267
      %s269 = ssub.s32 %s32, %s44
      %p270 = scmp.eq.s32.totalorder %s269, 0
      %s272 = sadd.s32 %s271, 1
      %s273 = scalar_select %p270, %s271, %s272
      %p276 = pneg %p270
      %p277 = scmp.eq.s32.totalorder %s25, 7
      %p278 = por %p276, %p277
      %p279 = scmp.ne.s32.totalorder %s271, %s274
      %p280 = scmp.eq.s32.totalorder %s25, 0
      %p281 = por %p279, %p280
      %p282 = scmp.ne.s32.totalorder %s271, %s274
      %p283 = scmp.eq.s32.totalorder %s30, 7
      %p284 = por %p282, %p283
      %p285 = scmp.ne.s32.totalorder %s274, %s275
      %p286 = scmp.eq.s32.totalorder %s30, 0
      %p287 = por %p285, %p286
      %p288 = scmp.ne.s32.totalorder %s274, %s275
      %p289 = scmp.eq.s32.totalorder %s31, 7
      %p290 = por %p288, %p289
      %p292 = scmp.ne.s32.totalorder %s275, %s291
      %p293 = scmp.eq.s32.totalorder %s31, 0
      %p294 = por %p292, %p293
      %s295 = ssub.s32 %s32, %s44
      %p296 = scmp.eq.s32.totalorder %s295, 0
      %s298 = sadd.s32 %s297, 1
      %s299 = scalar_select %p296, %s297, %s298
      %p302 = pneg %p296
      %p303 = scmp.eq.s32.totalorder %s25, 7
      %p304 = por %p302, %p303
      %p305 = scmp.ne.s32.totalorder %s297, %s300
      %p306 = scmp.eq.s32.totalorder %s25, 0
      %p307 = por %p305, %p306
      %p308 = scmp.ne.s32.totalorder %s297, %s300
      %p309 = scmp.eq.s32.totalorder %s30, 7
      %p310 = por %p308, %p309
      %p311 = scmp.ne.s32.totalorder %s300, %s301
      %p312 = scmp.eq.s32.totalorder %s30, 0
      %p313 = por %p311, %p312
      %p314 = scmp.ne.s32.totalorder %s300, %s301
      %p315 = scmp.eq.s32.totalorder %s31, 7
      %p316 = por %p314, %p315
      %p318 = scmp.ne.s32.totalorder %s301, %s317
      %p319 = scmp.eq.s32.totalorder %s31, 0
      %p320 = por %p318, %p319
      %s321 = ssub.s32 %s32, %s44
      %s322 = ssub.s32 %s33, %s40
      %s323 = sor.u32 %s321, %s322
      %p324 = scmp.eq.s32.totalorder %s323, 0
      %s326 = sadd.s32 %s325, 1
      %s327 = scalar_select %p324, %s325, %s326
      %p330 = pneg %p324
      %p331 = scmp.eq.s32.totalorder %s25, 7
      %p332 = por %p330, %p331
      %p333 = scmp.ne.s32.totalorder %s325, %s328
      %p334 = scmp.eq.s32.totalorder %s25, 0
      %p335 = por %p333, %p334
      %p336 = scmp.ne.s32.totalorder %s325, %s328
      %p337 = scmp.eq.s32.totalorder %s30, 7
      %p338 = por %p336, %p337
      %p339 = scmp.ne.s32.totalorder %s328, %s329
      %p340 = scmp.eq.s32.totalorder %s30, 0
      %p341 = por %p339, %p340
      %p342 = scmp.ne.s32.totalorder %s328, %s329
      %p343 = scmp.eq.s32.totalorder %s31, 7
      %p344 = por %p342, %p343
      %p346 = scmp.ne.s32.totalorder %s329, %s345
      %p347 = scmp.eq.s32.totalorder %s31, 0
      %p348 = por %p346, %p347
      %p349 = scmp.le.s32.totalorder 1, %s25
      %p350 = scmp.lt.s32.totalorder %s25, 9
      %p351 = pnand %p349, %p350
      %p352 = pneg %p351
      // Predicated region
      $region9: #{tpu_custom_call.1} parent=5 // pred_check
        _
      $region10: #{tpu_custom_call.1} parent=5 // pred_check_branch
        %354 = sbr.rel (%p351) target = $region12
      $region11: #{tpu_custom_call.1} parent=5 // pred_region
        %s355 = ssub.s32 %s25, 1
        // Predicated region
        $region13: #{tpu_custom_call.1} parent=11 // pred_check
          %p356 = pneg %p58
        $region14: #{tpu_custom_call.1} parent=11 // pred_check_branch
          %358 = sbr.rel (%p356) target = $region16
        $region15: #{tpu_custom_call.1} parent=11 // pred_region
          %360 = vsyncadd [#allocation4], 0
          %s362 = sshll.u32 %s0, 4
          %s363 = int_to_ptr.vmem [resolvable:$true] %s362
          %365 = dma.vmem_to_smem %s363, 16, [#allocation2], [#allocation4]
        $region16: #{tpu_custom_call.1} parent=11 // pred_fallthru
          _
        // Predicated region
        $region17: #{tpu_custom_call.1} parent=11 // pred_check
          %p366 = pneg %p261
        $region18: #{tpu_custom_call.1} parent=11 // pred_check_branch
          %368 = sbr.rel (%p366) target = $region20
        $region19: #{tpu_custom_call.1} parent=11 // pred_region
          _
        $region20: #{tpu_custom_call.1} parent=11 // pred_fallthru
          _
      $region12: #{tpu_custom_call.1} parent=5 // pred_fallthru
        _
      %p369 = scmp.lt.s32.totalorder %s25, 8
      // Predicated region
      $region21: #{tpu_custom_call.1} parent=5 // pred_check
        %p370 = pneg %p369
      $region22: #{tpu_custom_call.1} parent=5 // pred_check_branch
        %372 = sbr.rel (%p370) target = $region24
      $region23: #{tpu_custom_call.1} parent=5 // pred_region
        // Predicated region
        $region25: #{tpu_custom_call.1} parent=23 // pred_check
          %p373 = pneg %p78
        $region26: #{tpu_custom_call.1} parent=23 // pred_check_branch
          %375 = sbr.rel (%p373) target = $region28
        $region27: #{tpu_custom_call.1} parent=23 // pred_region
          %p376 = scmp.lt.s32.totalorder %s32, 1
          %s377 = scalar_select %p376, %s32, 1
          %s378 = smul.addr %s377, 8
          %s379 = scalar_lea.vmem %s1, %s378
        $region28: #{tpu_custom_call.1} parent=23 // pred_fallthru
          _
        // Predicated region
        $region29: #{tpu_custom_call.1} parent=23 // pred_check
          %p380 = pneg %p104
        $region30: #{tpu_custom_call.1} parent=23 // pred_check_branch
          %382 = sbr.rel (%p380) target = $region32
        $region31: #{tpu_custom_call.1} parent=23 // pred_region
          %p383 = scmp.lt.s32.totalorder %s32, 1
          %s384 = scalar_select %p383, %s32, 1
          %s385 = smul.addr %s384, 8
          %s386 = scalar_lea.vmem %s2, %s385
        $region32: #{tpu_custom_call.1} parent=23 // pred_fallthru
          _
        // Predicated region
        $region33: #{tpu_custom_call.1} parent=23 // pred_check
          %p387 = pneg %p130
        $region34: #{tpu_custom_call.1} parent=23 // pred_check_branch
          %389 = sbr.rel (%p387) target = $region36
        $region35: #{tpu_custom_call.1} parent=23 // pred_region
          %p390 = scmp.lt.s32.totalorder %s32, 1
          %s391 = scalar_select %p390, %s32, 1
          %s392 = smul.addr %s391, 8
          %s393 = scalar_lea.vmem %s3, %s392
        $region36: #{tpu_custom_call.1} parent=23 // pred_fallthru
          _
        // Predicated region
        $region37: #{tpu_custom_call.1} parent=23 // pred_check
          %p394 = pneg %p156
        $region38: #{tpu_custom_call.1} parent=23 // pred_check_branch
          %396 = sbr.rel (%p394) target = $region40
        $region39: #{tpu_custom_call.1} parent=23 // pred_region
          %p397 = scmp.lt.s32.totalorder %s33, 3
          %s398 = scalar_select %p397, %s33, 3
          %s399 = smul.addr %s398, 4
          %s400 = smul.addr %s399, 8
          %s401 = scalar_lea.vmem %s4, %s400
        $region40: #{tpu_custom_call.1} parent=23 // pred_fallthru
          _
        // Predicated region
        $region41: #{tpu_custom_call.1} parent=23 // pred_check
          %p402 = pneg %p182
        $region42: #{tpu_custom_call.1} parent=23 // pred_check_branch
          %404 = sbr.rel (%p402) target = $region44
        $region43: #{tpu_custom_call.1} parent=23 // pred_region
          %p405 = scmp.lt.s32.totalorder %s33, 3
          %s406 = scalar_select %p405, %s33, 3
          %s407 = smul.addr %s406, 4
          %s408 = smul.addr %s407, 8
          %s409 = scalar_lea.vmem %s5, %s408
        $region44: #{tpu_custom_call.1} parent=23 // pred_fallthru
          _
        // Predicated region
        $region45: #{tpu_custom_call.1} parent=23 // pred_check
          %p410 = pneg %p208
        $region46: #{tpu_custom_call.1} parent=23 // pred_check_branch
          %412 = sbr.rel (%p410) target = $region48
        $region47: #{tpu_custom_call.1} parent=23 // pred_region
          %p413 = scmp.lt.s32.totalorder %s33, 3
          %s414 = scalar_select %p413, %s33, 3
          %s415 = smul.addr %s414, 4
          %s416 = smul.addr %s415, 8
          %s417 = scalar_lea.vmem %s6, %s416
        $region48: #{tpu_custom_call.1} parent=23 // pred_fallthru
          _
        // Predicated region
        $region49: #{tpu_custom_call.1} parent=23 // pred_check
          %p418 = pneg %p234
        $region50: #{tpu_custom_call.1} parent=23 // pred_check_branch
          %420 = sbr.rel (%p418) target = $region52
        $region51: #{tpu_custom_call.1} parent=23 // pred_region
          %p421 = scmp.lt.s32.totalorder %s33, 3
          %s422 = scalar_select %p421, %s33, 3
          %s423 = smul.addr %s422, 8
          %s424 = scalar_lea.vmem %s7, %s423
        $region52: #{tpu_custom_call.1} parent=23 // pred_fallthru
          _
        // Predicated region
        $region53: #{tpu_custom_call.1} parent=23 // pred_check
          %p425 = pneg %p281
        $region54: #{tpu_custom_call.1} parent=23 // pred_check_branch
          %427 = sbr.rel (%p425) target = $region56
        $region55: #{tpu_custom_call.1} parent=23 // pred_region
          %p428 = scmp.lt.s32.totalorder %s32, 1
          %s429 = scalar_select %p428, %s32, 1
          %s430 = smul.addr %s429, 8
          %s431 = scalar_lea.vmem %s9, %s430
        $region56: #{tpu_custom_call.1} parent=23 // pred_fallthru
          _
      $region24: #{tpu_custom_call.1} parent=5 // pred_fallthru
        _
      %p432 = scmp.le.s32.totalorder 1, %s25
      %p433 = scmp.lt.s32.totalorder %s25, 9
      %p434 = pnand %p432, %p433
      %p435 = pneg %p434
      // Predicated region
      $region57: #{tpu_custom_call.1} parent=5 // pred_check
        _
      $region58: #{tpu_custom_call.1} parent=5 // pred_check_branch
        %437 = sbr.rel (%p434) target = $region60
      $region59: #{tpu_custom_call.1} parent=5 // pred_region
        %s438 = ssub.s32 %s25, 1
        // Predicated region
        $region61: #{tpu_custom_call.1} parent=59 // pred_check
          %p439 = pneg %p58
        $region62: #{tpu_custom_call.1} parent=59 // pred_check_branch
          %441 = sbr.rel (%p439) target = $region64
        $region63: #{tpu_custom_call.1} parent=59 // pred_region
          %443 = dma.done [#allocation4], 16
        $region64: #{tpu_custom_call.1} parent=59 // pred_fallthru
          _
        %444 = sfence
        %p445 = pneg %p58
        %p446 = pneg %p55
        %p447 = scmp.lt.s32.totalorder %s34, 1
        %s448 = scalar_select %p447, %s34, 1
        %s449 = smul.addr %s448, 8
        %s450 = scalar_lea.vmem %s1, %s449
        %p451 = pneg %p84
        %p452 = pneg %p81
        %p453 = scmp.lt.s32.totalorder %s34, 1
        %s454 = scalar_select %p453, %s34, 1
        %s455 = smul.addr %s454, 8
        %s456 = scalar_lea.vmem %s2, %s455
        %p457 = pneg %p110
        %p458 = pneg %p107
        %p459 = scmp.lt.s32.totalorder %s34, 1
        %s460 = scalar_select %p459, %s34, 1
        %s461 = smul.addr %s460, 8
        %s462 = scalar_lea.vmem %s3, %s461
        %p463 = pneg %p136
        %p464 = pneg %p133
        %p465 = scmp.lt.s32.totalorder %s35, 3
        %s466 = scalar_select %p465, %s35, 3
        %s467 = smul.addr %s466, 4
        %s468 = smul.addr %s467, 8
        %s469 = scalar_lea.vmem %s4, %s468
        %p470 = pneg %p162
        %p471 = pneg %p159
        %p472 = scmp.lt.s32.totalorder %s35, 3
        %s473 = scalar_select %p472, %s35, 3
        %s474 = smul.addr %s473, 4
        %s475 = smul.addr %s474, 8
        %s476 = scalar_lea.vmem %s5, %s475
        %p477 = pneg %p188
        %p478 = pneg %p185
        %p479 = scmp.lt.s32.totalorder %s35, 3
        %s480 = scalar_select %p479, %s35, 3
        %s481 = smul.addr %s480, 4
        %s482 = smul.addr %s481, 8
        %s483 = scalar_lea.vmem %s6, %s482
        %p484 = pneg %p214
        %p485 = pneg %p211
        %p486 = scmp.lt.s32.totalorder %s35, 3
        %s487 = scalar_select %p486, %s35, 3
        %s488 = smul.addr %s487, 8
        %s489 = scalar_lea.vmem %s7, %s488
        %p490 = pneg %p240
        %p491 = pneg %p237
        %p492 = pneg %p261
        %p493 = pneg %p258
        %p494 = scmp.lt.s32.totalorder %s34, 1
        %s495 = scalar_select %p494, %s34, 1
        %s496 = smul.addr %s495, 8
        %s497 = scalar_lea.vmem %s9, %s496
        %p498 = pneg %p287
        %p499 = pneg %p284
        %p500 = pneg %p313
        %p501 = pneg %p310
        %s502 = sand.u32 %s300, 1
        %s503 = scalar_lea.sflag [#allocation3], %s502
        %s504 = sand.u32 %s300, 1
        %s505 = smul.addr %s504, 8
        %s506 = scalar_lea.vmem [#allocation5], %s505
        %p507 = pneg %p341
        %p508 = pneg %p338
        %s509 = sand.u32 %s328, 1
        %s510 = scalar_lea.sflag [#allocation7], %s509
        %s511 = sand.u32 %s328, 1
        %s512 = smul.addr %s511, 8
        %s513 = scalar_lea.vmem [#allocation6], %s512
        %p514 = scmp.lt.s32.totalorder %s34, 1
        %s515 = scalar_select %p514, %s34, 1
        %s516 = smul.addr %s515, 8
        %s517 = scalar_lea.vmem %s1, %s516
        %p518 = scmp.lt.s32.totalorder %s34, 1
        %s519 = scalar_select %p518, %s34, 1
        %s520 = smul.addr %s519, 8
        %s521 = scalar_lea.vmem %s2, %s520
        %p522 = scmp.lt.s32.totalorder %s34, 1
        %s523 = scalar_select %p522, %s34, 1
        %s524 = smul.addr %s523, 8
        %s525 = scalar_lea.vmem %s3, %s524
        %p526 = scmp.lt.s32.totalorder %s35, 3
        %s527 = scalar_select %p526, %s35, 3
        %s528 = smul.addr %s527, 4
        %s529 = smul.addr %s528, 8
        %s530 = scalar_lea.vmem %s4, %s529
        %p531 = scmp.lt.s32.totalorder %s35, 3
        %s532 = scalar_select %p531, %s35, 3
        %s533 = smul.addr %s532, 4
        %s534 = smul.addr %s533, 8
        %s535 = scalar_lea.vmem %s5, %s534
        %p536 = scmp.lt.s32.totalorder %s35, 3
        %s537 = scalar_select %p536, %s35, 3
        %s538 = smul.addr %s537, 4
        %s539 = smul.addr %s538, 8
        %s540 = scalar_lea.vmem %s6, %s539
        %p541 = scmp.lt.s32.totalorder %s35, 3
        %s542 = scalar_select %p541, %s35, 3
        %s543 = smul.addr %s542, 8
        %s544 = scalar_lea.vmem %s7, %s543
        %p545 = scmp.lt.s32.totalorder %s34, 1
        %s546 = scalar_select %p545, %s34, 1
        %s547 = smul.addr %s546, 8
        %s548 = scalar_lea.vmem %s9, %s547
        %v549 = vld [vmem:[%s517] sm:$0xff]
        %v550 = vld [vmem:[%s521] sm:$0xff]
        %v551 = vld [vmem:[%s525] sm:$0xff]
        %v552 = vld [vmem:[%s530] sm:$0xff]
        %v553 = vld [vmem:[%s530 + $0x8] sm:$0xff]
        %v554 = vld [vmem:[%s530 + $0x10] sm:$0xff]
        %v555 = vld [vmem:[%s530 + $0x18] sm:$0xff]
        %v556 = vld [vmem:[%s535] sm:$0xff]
        %v557 = vld [vmem:[%s535 + $0x8] sm:$0xff]
        %v558 = vld [vmem:[%s535 + $0x10] sm:$0xff]
        %v559 = vld [vmem:[%s535 + $0x18] sm:$0xff]
        %v560 = vld [vmem:[%s540] sm:$0xff]
        %v561 = vld [vmem:[%s540 + $0x8] sm:$0xff]
        %v562 = vld [vmem:[%s540 + $0x10] sm:$0xff]
        %v563 = vld [vmem:[%s540 + $0x18] sm:$0xff]
        %v564 = vld [vmem:[%s544] sm:$0xff]
        %vm565 = vcmask 261120
        %v567 = vsel %vm565, %v549, 0
        %569 = vmatpush.msra.mxu0 0.0
        %570 = vmatpush.msra.mxu0 0.0
        %571 = vmatpush.msra.mxu0 0.0
        %572 = vmatpush.msra.mxu0 0.0
        %573 = vmatpush.msra.mxu0 0.0
        %574 = vmatpush.msra.mxu0 0.0
        %575 = vmatpush.msra.mxu0 0.0
        %576 = vmatpush.msra.mxu0 0.0
        %577 = vmatpush.msra.mxu0 0.0
        %578 = vmatpush.msra.mxu0 0.0
        %579 = vmatpush.msra.mxu0 0.0
        %580 = vmatpush.msra.mxu0 0.0
        %581 = vmatpush.msra.mxu0 %v555
        %582 = vmatpush.msra.mxu0 %v554
        %583 = vmatpush.msra.mxu0 %v553
        %584 = vmatpush.msra.mxu0 %v552
        %585 = vmatmul.f32.gmra.mxu0 %v567
        %v586 = vpop.f32.mrf.mxu0
        %v587 = vadd.f32 0.0, %v586
        %588 = vdwg.mxu0
        %v590 = vsel %vm565, %v550, 0
        %592 = vmatpush.msra.mxu0 0.0
        %593 = vmatpush.msra.mxu0 0.0
        %594 = vmatpush.msra.mxu0 0.0
        %595 = vmatpush.msra.mxu0 0.0
        %596 = vmatpush.msra.mxu0 0.0
        %597 = vmatpush.msra.mxu0 0.0
        %598 = vmatpush.msra.mxu0 0.0
        %599 = vmatpush.msra.mxu0 0.0
        %600 = vmatpush.msra.mxu0 0.0
        %601 = vmatpush.msra.mxu0 0.0
        %602 = vmatpush.msra.mxu0 0.0
        %603 = vmatpush.msra.mxu0 0.0
        %604 = vmatpush.msra.mxu0 %v559
        %605 = vmatpush.msra.mxu0 %v558
        %606 = vmatpush.msra.mxu0 %v557
        %607 = vmatpush.msra.mxu0 %v556
        %608 = vmatmul.f32.gmra.mxu0 %v590
        %v609 = vpop.f32.mrf.mxu0
        %v610 = vadd.f32 0.0, %v609
        %611 = vdwg.mxu0
        %v613 = vsel %vm565, %v551, 0
        %615 = vmatpush.msra.mxu0 0.0
        %616 = vmatpush.msra.mxu0 0.0
        %617 = vmatpush.msra.mxu0 0.0
        %618 = vmatpush.msra.mxu0 0.0
        %619 = vmatpush.msra.mxu0 0.0
        %620 = vmatpush.msra.mxu0 0.0
        %621 = vmatpush.msra.mxu0 0.0
        %622 = vmatpush.msra.mxu0 0.0
        %623 = vmatpush.msra.mxu0 0.0
        %624 = vmatpush.msra.mxu0 0.0
        %625 = vmatpush.msra.mxu0 0.0
        %626 = vmatpush.msra.mxu0 0.0
        %627 = vmatpush.msra.mxu0 %v563
        %628 = vmatpush.msra.mxu0 %v562
        %629 = vmatpush.msra.mxu0 %v561
        %630 = vmatpush.msra.mxu0 %v560
        %631 = vmatmul.f32.gmra.mxu0 %v613
        %v632 = vpop.f32.mrf.mxu0
        %v633 = vadd.f32 0.0, %v632
        %634 = vdwg.mxu0
        %vm635 = vcmask 64512
        %v637 = vsel %vm635, %v587, 0
        %v640 = vsel %vm635, %v610, 0
        %642 = vmatpush.xpose.msra.mxu0 0.0
        %643 = vmatpush.xpose.msra.mxu0 0.0
        %644 = vmatpush.xpose.msra.mxu0 0.0
        %645 = vmatpush.xpose.msra.mxu0 0.0
        %646 = vmatpush.xpose.msra.mxu0 0.0
        %647 = vmatpush.xpose.msra.mxu0 0.0
        %648 = vmatpush.xpose.msra.mxu0 0.0
        %649 = vmatpush.xpose.msra.mxu0 0.0
        %650 = vmatpush.xpose.msra.mxu0 0.0
        %651 = vmatpush.xpose.msra.mxu0 0.0
        %652 = vmatpush.xpose.msra.mxu0 0.0
        %653 = vmatpush.xpose.msra.mxu0 0.0
        %654 = vmatpush.xpose.msra.mxu0 0.0
        %655 = vmatpush.xpose.msra.mxu0 0.0
        %656 = vmatpush.xpose.msra.mxu0 0.0
        %657 = vmatpush.xpose.msra.mxu0 %v640
        %658 = vmatmul.f32.gmra.mxu0 %v637
        %v659 = vpop.f32.mrf.mxu0
        %v660 = vadd.f32 0.0, %v659
        %661 = vdwg.mxu0
        %v662 = vmul.f32 %v660, 0.35355338
        %s663 = sld [smem:[#allocation2 + %s35]]
        %v664 = vstv %s663
        %v665 = vadd.f32 %v662, %v664
        %v666 = vld [vmem:[%s548] sm:$0xff]
        %vm667 = vcmp.eq.s32.totalorder %v666, 0
        %v668 = vsel %vm667, -1e+09, %v665
        %v669 = vsel %vm635, %v668, -inf
        %670 = vmax.xlane.f32.xlu0 %v669
        %v671 = vpop.xlane.xlu0 %670
        %v672 = vsub.f32 %v668, %v671
        %v673 = vmul.f32 %v672, 1.442695
        %v674 = vpow.pop %v673
        %v675 = vsel %vm635, %v674, 0.0
        %676 = vadd.xlane.f32.xlu0 %v675
        %v677 = vpop.xlane.xlu0 %676
        %v678 = vrcp.pop %v677
        %v679 = vmul.f32 %v677, %v678
        %v680 = vsub.f32 1.0, %v679
        %v681 = vmul.f32 %v678, %v680
        %v682 = vadd.f32 %v678, %v681
        %vm683 = vweird.f32 %v677
        %vm684 = vweird.f32 %v678
        %vm685 = vmor %vm683, %vm684
        %v686 = vsel %vm685, %v678, %v682
        %v687 = vand.u32 2147483647, %v677
        %vm688 = vcmp.eq.f32.partialorder %v687, 8.507059e+37
        %v689 = vand.u32 %v677, 2147483648
        %v690 = vor.u32 1.1754944e-38, %v689
        %v691 = vsel %vm688, %v690, %v686
        %v692 = vmul.f32 %v674, %v691
        %693 = vst.msk [vmem:[%s513] sm:$0xff] %vm635, %v692
        %v695 = vsel %vm635, %v692, 0
        %697 = vmatpush.msra.mxu0 0.0
        %698 = vmatpush.msra.mxu0 0.0
        %699 = vmatpush.msra.mxu0 0.0
        %700 = vmatpush.msra.mxu0 0.0
        %701 = vmatpush.msra.mxu0 0.0
        %702 = vmatpush.msra.mxu0 0.0
        %703 = vmatpush.msra.mxu0 0.0
        %704 = vmatpush.msra.mxu0 0.0
        %705 = vmatpush.msra.mxu0 0.0
        %706 = vmatpush.msra.mxu0 0.0
        %707 = vmatpush.msra.mxu0 0.0
        %708 = vmatpush.msra.mxu0 0.0
        %709 = vmatpush.msra.mxu0 0.0
        %710 = vmatpush.msra.mxu0 0.0
        %711 = vmatpush.msra.mxu0 0.0
        %712 = vmatpush.msra.mxu0 %v633
        %713 = vmatmul.f32.gmra.mxu0 %v695
        %v714 = vpop.f32.mrf.mxu0
        %v715 = vadd.f32 0.0, %v714
        %716 = vdwg.mxu0
        %v718 = vsel %vm635, %v715, 0
        %720 = vmatpush.msra.mxu0 0.0
        %721 = vmatpush.msra.mxu0 0.0
        %722 = vmatpush.msra.mxu0 0.0
        %723 = vmatpush.msra.mxu0 0.0
        %724 = vmatpush.msra.mxu0 0.0
        %725 = vmatpush.msra.mxu0 0.0
        %726 = vmatpush.msra.mxu0 0.0
        %727 = vmatpush.msra.mxu0 0.0
        %728 = vmatpush.msra.mxu0 0.0
        %729 = vmatpush.msra.mxu0 0.0
        %730 = vmatpush.msra.mxu0 0.0
        %731 = vmatpush.msra.mxu0 0.0
        %732 = vmatpush.msra.mxu0 0.0
        %733 = vmatpush.msra.mxu0 0.0
        %734 = vmatpush.msra.mxu0 0.0
        %735 = vmatpush.msra.mxu0 %v564
        %736 = vmatmul.f32.gmra.mxu0 %v718
        %v737 = vpop.f32.mrf.mxu0
        %v738 = vadd.f32 0.0, %v737
        %739 = vdwg.mxu0
        %p740 = scmp.eq.s32.totalorder %s35, 0
        // Predicated region
        $region65: #{tpu_custom_call.1} parent=59 // pred_check
          %p741 = pneg %p740
        $region66: #{tpu_custom_call.1} parent=59 // pred_check_branch
          %743 = sbr.rel (%p741) target = $region68
        $region67: #{tpu_custom_call.1} parent=59 // pred_region
          %v744 = vld [vmem:[%s8] sm:$0x1]
          %v746 = vperm.slane %v744, 0
          %v748 = vadd.f32 %v738, %v746
          %749 = vst.msk [vmem:[%s506] sm:$0xff] %vm565, %v748
        $region68: #{tpu_custom_call.1} parent=59 // pred_fallthru
          _
        %p750 = scmp.ne.s32.totalorder %s35, 0
        // Predicated region
        $region69: #{tpu_custom_call.1} parent=59 // pred_check
          %p751 = pneg %p750
        $region70: #{tpu_custom_call.1} parent=59 // pred_check_branch
          %753 = sbr.rel (%p751) target = $region72
        $region71: #{tpu_custom_call.1} parent=59 // pred_region
          %v754 = vld [vmem:[%s506] sm:$0xff]
          %v755 = vadd.f32 %v754, %v738
          %756 = vst.msk [vmem:[%s506] sm:$0xff] %vm565, %v755
        $region72: #{tpu_custom_call.1} parent=59 // pred_fallthru
          _
        %s757 = sand.u32 %s300, 1
        %s758 = scalar_lea.sflag [#allocation3], %s757
        %s759 = sand.u32 %s300, 1
        %s760 = smul.addr %s759, 8
        %s761 = scalar_lea.vmem [#allocation5], %s760
        %s762 = sand.u32 %s328, 1
        %s763 = scalar_lea.sflag [#allocation7], %s762
        %s764 = sand.u32 %s328, 1
        %s765 = smul.addr %s764, 8
        %s766 = scalar_lea.vmem [#allocation6], %s765
        // Predicated region
        $region73: #{tpu_custom_call.1} parent=59 // pred_check
          %p767 = pneg %p310
        $region74: #{tpu_custom_call.1} parent=59 // pred_check_branch
          %769 = sbr.rel (%p767) target = $region76
        $region75: #{tpu_custom_call.1} parent=59 // pred_region
          %771 = vsyncadd %s758, 0
          %s772 = smul.addr %s34, 8
          %s773 = scalar_lea.hbm %s10, %s772
          %s775 = sshll.u32 %s761, 4
          %s776 = int_to_ptr.vmem [resolvable:$true] %s775
          %s777 = sshll.u32 %s773, 4
          %s778 = int_to_ptr.hbm [resolvable:$true] %s777
          %780 = dma.vmem_to_hbm [thread:$0]  %s776, 128, %s778, %s758
        $region76: #{tpu_custom_call.1} parent=59 // pred_fallthru
          _
        // Predicated region
        $region77: #{tpu_custom_call.1} parent=59 // pred_check
          %p781 = pneg %p338
        $region78: #{tpu_custom_call.1} parent=59 // pred_check_branch
          %783 = sbr.rel (%p781) target = $region80
        $region79: #{tpu_custom_call.1} parent=59 // pred_region
          %785 = vsyncadd %s763, 0
          %s786 = smul.addr %s34, 4
          %s787 = sadd.s32 %s35, %s786
          %s788 = smul.addr %s787, 8
          %s789 = scalar_lea.hbm %s11, %s788
          %s791 = sshll.u32 %s766, 4
          %s792 = int_to_ptr.vmem [resolvable:$true] %s791
          %s793 = sshll.u32 %s789, 4
          %s794 = int_to_ptr.hbm [resolvable:$true] %s793
          %796 = dma.vmem_to_hbm [thread:$0]  %s792, 128, %s794, %s763
        $region80: #{tpu_custom_call.1} parent=59 // pred_fallthru
          _
      $region60: #{tpu_custom_call.1} parent=5 // pred_fallthru
        _
      %p797 = scmp.le.s32.totalorder 2, %s25
      // Predicated region
      $region81: #{tpu_custom_call.1} parent=5 // pred_check
        %p798 = pneg %p797
      $region82: #{tpu_custom_call.1} parent=5 // pred_check_branch
        %800 = sbr.rel (%p798) target = $region84
      $region83: #{tpu_custom_call.1} parent=5 // pred_region
        %s801 = ssub.s32 %s25, 2
        // Predicated region
        $region85: #{tpu_custom_call.1} parent=83 // pred_check
          %p802 = pneg %p316
        $region86: #{tpu_custom_call.1} parent=83 // pred_check_branch
          %804 = sbr.rel (%p802) target = $region88
        $region87: #{tpu_custom_call.1} parent=83 // pred_region
          %s805 = sand.u32 %s301, 1
          %s806 = scalar_lea.sflag [#allocation3], %s805
          %s807 = sand.u32 %s301, 1
          %s808 = smul.addr %s807, 8
          %s809 = scalar_lea.vmem [#allocation5], %s808
          %811 = dma.done %s806, 128
        $region88: #{tpu_custom_call.1} parent=83 // pred_fallthru
          _
        // Predicated region
        $region89: #{tpu_custom_call.1} parent=83 // pred_check
          %p812 = pneg %p344
        $region90: #{tpu_custom_call.1} parent=83 // pred_check_branch
          %814 = sbr.rel (%p812) target = $region92
        $region91: #{tpu_custom_call.1} parent=83 // pred_region
          %s815 = sand.u32 %s329, 1
          %s816 = scalar_lea.sflag [#allocation7], %s815
          %s817 = sand.u32 %s329, 1
          %s818 = smul.addr %s817, 8
          %s819 = scalar_lea.vmem [#allocation6], %s818
          %821 = dma.done %s816, 128
        $region92: #{tpu_custom_call.1} parent=83 // pred_fallthru
          _
      $region84: #{tpu_custom_call.1} parent=5 // pred_fallthru
        _
    $region6: #{tpu_custom_call.1} parent=1 // loop_footer
      %s29 = sadd.s32 1, %s25
    $region7: #{tpu_custom_call.1} parent=1 // loop_footer_branch
      %24 = sbr.rel target = $region3
    $region8: #{tpu_custom_call.1} parent=1 // loop_exit
      _
    %822 = vsyncpa [#allocation3], 1
    %s823 = scalar_lea.sflag [#allocation3], 1
    %824 = vsyncpa %s823, 1
    %825 = vsyncpa [#allocation7], 1
    %s826 = scalar_lea.sflag [#allocation7], 1
    %827 = vsyncpa %s826, 1
    %828 = vsyncpa [#allocation4], 1
    %s829 = scalar_lea.sflag [#allocation4], 1
    %830 = vsyncpa %s829, 1

</llo_original>
